<compile_context>
chip_gen: v7x
topology: tpu7x:2x2x1
jax: 0.10.0
libtpu: 0.0.40
codegen_flags: <defaults>
</compile_context>

<pallas_src>
import functools

import jax
import jax.numpy as jnp
import numpy as np
from jax.experimental import pallas as pl
from jax.experimental.pallas import tpu as pltpu


def vanilla_conv_kernel(ids_ref, emb_ref, wconv_ref, bconv_ref, pooled_ref,
                        x_sc, patch_sc, *, tile_b, seq_len, kernel_size):
    """Fused embed-gather + im2col conv1d + tanh + global max-pool for one batch tile.

    ids_ref:    (B, L) int32        scalar-prefetch token ids (SMEM)
    emb_ref:    (V, E) f32          full embedding table (VMEM)
    wconv_ref:  (K*E, F) bf16       conv weight, torch (F,E,K) -> (K,E,F) -> (K*E,F)
    bconv_ref:  (1, F) f32          conv bias
    pooled_ref: (TILE_B, F) f32     per-step lane-dense output block
    x_sc:       (TILE_B*L, E) f32   gathered embeddings scratch
    patch_sc:   (TILE_B*Lo, K*E)f32 im2col patch matrix scratch
    """
    L = seq_len
    K = kernel_size
    Lo = L - K + 1
    E = emb_ref.shape[1]
    step = pl.program_id(0)

    # 1) Fused embedding lookup: gather TILE_B*L rows of the table into VMEM scratch.
    for bb in range(tile_b):
        for l in range(L):
            idx = ids_ref[step * tile_b + bb, l]                       # SMEM scalar
            x_sc[pl.ds(bb * L + l, 1), :] = emb_ref[pl.ds(idx, 1), :]  # dyn row copy

    # 2) im2col: K shifted copies laid side-by-side on the lane axis, batch folded
    #    into the M (sublane) axis -> one deep matmul instead of K shallow ones.
    for bb in range(tile_b):
        for k in range(K):
            patch_sc[pl.ds(bb * Lo, Lo), pl.ds(k * E, E)] = \
                x_sc[pl.ds(bb * L + k, Lo), :]

    # 3) Single MXU matmul: bf16 inputs, f32 accumulation.
    patches = patch_sc[...].astype(jnp.bfloat16)          # (TILE_B*Lo, K*E)
    acc = jnp.dot(patches, wconv_ref[...],
                  preferred_element_type=jnp.float32)      # (TILE_B*Lo, F) f32

    # 4) f32 epilogue (bias + tanh) and per-batch global max-pool over time.
    act = jnp.tanh(acc + bconv_ref[...])                   # (TILE_B*Lo, F)
    rows = [jnp.max(act[bb * Lo:(bb + 1) * Lo, :], axis=0, keepdims=True)
            for bb in range(tile_b)]
    pooled_ref[...] = jnp.concatenate(rows, axis=0)        # (TILE_B, F) single store


def vanilla_conv_forward(x_ids, target, embed_w, conv_w, conv_b, fc_w, fc_b):
    """Full forward: returns (yhat, loss) matching the PyTorch module."""
    B, L = x_ids.shape
    V, E = embed_w.shape
    F_, E_, K = conv_w.shape
    assert E_ == E
    Lo = L - K + 1

    # One grid step covers the whole (toy) batch; at scale pick TILE_B as a
    # multiple of 8 that keeps the per-step VMEM footprint under the scoped limit
    # (32 MiB default on v7x).
    TILE_B = B
    assert B % TILE_B == 0

    ids = x_ids.astype(jnp.int32)
    emb = embed_w.astype(jnp.float32)
    # torch conv weight (F, E, K) -> (K, E, F) -> (K*E, F); bf16 MXU input dtype.
    w2 = jnp.transpose(conv_w, (2, 1, 0)).reshape(K * E, F_).astype(jnp.bfloat16)
    bconv = conv_b.reshape(1, F_).astype(jnp.float32)

    kernel = functools.partial(vanilla_conv_kernel,
                               tile_b=TILE_B, seq_len=L, kernel_size=K)

    grid_spec = pltpu.PrefetchScalarGridSpec(
        num_scalar_prefetch=1,                       # ids -> SMEM, visible to index_maps
        grid=(pl.cdiv(B, TILE_B),),
        in_specs=[
            pl.BlockSpec((V, E), lambda b, ids: (0, 0)),        # embedding table
            pl.BlockSpec((K * E, F_), lambda b, ids: (0, 0)),   # im2col conv weight
            pl.BlockSpec((1, F_), lambda b, ids: (0, 0)),       # conv bias
        ],
        out_specs=pl.BlockSpec((TILE_B, F_), lambda b, ids: (b, 0)),  # per-step block
        scratch_shapes=[
            pltpu.VMEM((TILE_B * L, E), jnp.float32),       # gathered embeddings
            pltpu.VMEM((TILE_B * Lo, K * E), jnp.float32),  # im2col patches
        ],
    )

    pooled = pl.pallas_call(
        kernel,
        out_shape=jax.ShapeDtypeStruct((B, F_), jnp.float32),
        grid_spec=grid_spec,
        compiler_params=pltpu.CompilerParams(
            dimension_semantics=("parallel",)),      # batch-tile axis: megacore-shardable
    )(ids, emb, w2, bconv)

    # Tiny Linear(F,1) + sigmoid + BCE (mean) in plain JAX (O(F) flops).
    logit = pooled @ fc_w.reshape(F_, 1).astype(jnp.float32) \
        + fc_b.reshape(1, 1).astype(jnp.float32)
    yhat = jax.nn.sigmoid(logit)
    eps = 1e-7
    yc = jnp.clip(yhat, eps, 1.0 - eps)
    loss = -jnp.mean(target * jnp.log(yc) + (1.0 - target) * jnp.log(1.0 - yc))
    return yhat, loss


def reference_forward(x_ids, target, embed_w, conv_w, conv_b, fc_w, fc_b,
                      matmul_in_bf16=True):
    """Pure-JAX reference.  matmul_in_bf16=True mirrors the kernel's MXU input dtype."""
    x_emb = jnp.take(embed_w, x_ids, axis=0).astype(jnp.float32)   # (B, L, E)
    B, L, E = x_emb.shape
    F_, _, K = conv_w.shape
    Lo = L - K + 1

    w2 = jnp.transpose(conv_w, (2, 1, 0)).reshape(K * E, F_)
    patches = jnp.concatenate([x_emb[:, k:k + Lo, :] for k in range(K)], axis=-1)
    patches = patches.reshape(B * Lo, K * E)
    if matmul_in_bf16:
        patches = patches.astype(jnp.bfloat16)
        w2 = w2.astype(jnp.bfloat16)
    c = jnp.dot(patches, w2, preferred_element_type=jnp.float32)
    c = c + conv_b.reshape(1, F_).astype(jnp.float32)
    pooled = jnp.max(jnp.tanh(c).reshape(B, Lo, F_), axis=1)        # (B, F)

    logit = pooled @ fc_w.reshape(F_, 1).astype(jnp.float32) \
        + fc_b.reshape(1, 1).astype(jnp.float32)
    yhat = jax.nn.sigmoid(logit)
    eps = 1e-7
    yc = jnp.clip(yhat, eps, 1.0 - eps)
    loss = -jnp.mean(target * jnp.log(yc) + (1.0 - target) * jnp.log(1.0 - yc))
    return yhat, loss


if __name__ == "__main__":
    # Small shapes consistent with the module.
    B, L = 2, 16           # batch, sequence length
    E = 32                 # embed_size
    F_ = 16                # num_filter_maps
    K = 3                  # kernel_size
    VOCAB = 50             # vocab_size (the +2 of nn.Embedding absorbed below)

    key = jax.random.PRNGKey(0)
    k_emb, k_ids, k_cw, k_cb, k_fw, k_fb, k_t = jax.random.split(key, 7)

    embed_w = jax.random.normal(k_emb, (VOCAB + 2, E), jnp.float32)
    lim_c = float(np.sqrt(6.0 / (E * K + F_ * K)))            # xavier_uniform-like
    conv_w = jax.random.uniform(k_cw, (F_, E, K), jnp.float32, -lim_c, lim_c)
    conv_b = jax.random.uniform(k_cb, (F_,), jnp.float32, -0.1, 0.1)
    lim_f = float(np.sqrt(6.0 / (F_ + 1)))
    fc_w = jax.random.uniform(k_fw, (1, F_), jnp.float32, -lim_f, lim_f)
    fc_b = jax.random.uniform(k_fb, (1,), jnp.float32, -0.1, 0.1)

    x_ids = jax.random.randint(k_ids, (B, L), 0, VOCAB + 2)
    target = jax.random.uniform(k_t, (B, 1), jnp.float32)     # BCE target in [0, 1]

    yhat, loss = vanilla_conv_forward(x_ids, target, embed_w, conv_w, conv_b, fc_w, fc_b)
    yhat = jax.block_until_ready(yhat)
    loss = jax.block_until_ready(loss)

    # Tight check against a reference that uses the same bf16 MXU input quantization.
    yhat_q, loss_q = reference_forward(x_ids, target, embed_w, conv_w, conv_b,
                                       fc_w, fc_b, matmul_in_bf16=True)
    np.testing.assert_allclose(np.asarray(yhat), np.asarray(yhat_q),
                               rtol=1e-4, atol=1e-5)
    np.testing.assert_allclose(float(loss), float(loss_q), rtol=1e-4, atol=1e-5)

    # Loose semantic check against the pure-f32 module math (bf16 matmul inputs
    # introduce ~1e-2-level differences at most for these magnitudes).
    yhat_f, loss_f = reference_forward(x_ids, target, embed_w, conv_w, conv_b,
                                       fc_w, fc_b, matmul_in_bf16=False)
    np.testing.assert_allclose(np.asarray(yhat), np.asarray(yhat_f), rtol=0, atol=3e-2)
    np.testing.assert_allclose(float(loss), float(loss_f), rtol=0, atol=5e-2)

    print("KERNEL_OK")
</pallas_src>

<mosaic_0001>
module attributes {stable_mosaic.version = 11 : i64} {
  func.func @vanilla_conv_kernel(%arg0: i32, %arg1: memref<2x16xi32, #tpu.memory_space<smem>>, %arg2: memref<52x32xf32, #tpu.memory_space<vmem>>, %arg3: memref<96x16xbf16, #tpu.memory_space<vmem>>, %arg4: memref<1x16xf32, #tpu.memory_space<vmem>>, %arg5: memref<2x16xf32, #tpu.memory_space<vmem>>, %arg6: memref<32x32xf32, #tpu.memory_space<vmem>>, %arg7: memref<28x96xf32, #tpu.memory_space<vmem>>) attributes {dimension_semantics = [#tpu.dimension_semantics<parallel>], iteration_bounds = array<i64: 1>, scalar_prefetch = 1 : i64, scratch_operands = 2 : i64, tpu.core_type = #tpu.core_type<tc>, window_params = [{pipeline_mode = #tpu.pipeline_mode<synchronous>, transform_indices = @transform_0, window_bounds = array<i64: 52, 32>}, {pipeline_mode = #tpu.pipeline_mode<synchronous>, transform_indices = @transform_1, window_bounds = array<i64: 96, 16>}, {pipeline_mode = #tpu.pipeline_mode<synchronous>, transform_indices = @transform_2, window_bounds = array<i64: 1, 16>}, {transform_indices = @transform_3, window_bounds = array<i64: 2, 16>}]} {
    %c2_i32 = arith.constant 2 : i32
    %0 = arith.muli %arg0, %c2_i32 : i32
    %c0_i32 = arith.constant 0 : i32
    %1 = arith.addi %0, %c0_i32 : i32
    %2 = arith.index_cast %1 : i32 to index
    %c0 = arith.constant 0 : index
    %3 = memref.load %arg1[%2, %c0] : memref<2x16xi32, #tpu.memory_space<smem>>
    %4 = arith.index_cast %3 : i32 to index
    %c0_0 = arith.constant 0 : index
    %5 = vector.load %arg2[%4, %c0_0] : memref<52x32xf32, #tpu.memory_space<vmem>>, vector<1x32xf32>
    %c0_1 = arith.constant 0 : index
    %c0_2 = arith.constant 0 : index
    %6 = vector.load %arg6[%c0_1, %c0_2] : memref<32x32xf32, #tpu.memory_space<vmem>>, vector<1x32xf32>
    tpu.vector_store %arg6[%c0_1, %c0_2], %5 {strides = array<i32>} : memref<32x32xf32, #tpu.memory_space<vmem>>, vector<1x32xf32>,
    %c2_i32_3 = arith.constant 2 : i32
    %7 = arith.muli %arg0, %c2_i32_3 : i32
    %c0_i32_4 = arith.constant 0 : i32
    %8 = arith.addi %7, %c0_i32_4 : i32
    %9 = arith.index_cast %8 : i32 to index
    %c1 = arith.constant 1 : index
    %10 = memref.load %arg1[%9, %c1] : memref<2x16xi32, #tpu.memory_space<smem>>
    %11 = arith.index_cast %10 : i32 to index
    %c0_5 = arith.constant 0 : index
    %12 = vector.load %arg2[%11, %c0_5] : memref<52x32xf32, #tpu.memory_space<vmem>>, vector<1x32xf32>
    %c1_6 = arith.constant 1 : index
    %c0_7 = arith.constant 0 : index
    %13 = vector.load %arg6[%c1_6, %c0_7] : memref<32x32xf32, #tpu.memory_space<vmem>>, vector<1x32xf32>
    tpu.vector_store %arg6[%c1_6, %c0_7], %12 {strides = array<i32>} : memref<32x32xf32, #tpu.memory_space<vmem>>, vector<1x32xf32>,
    %c2_i32_8 = arith.constant 2 : i32
    %14 = arith.muli %arg0, %c2_i32_8 : i32
    %c0_i32_9 = arith.constant 0 : i32
    %15 = arith.addi %14, %c0_i32_9 : i32
    %16 = arith.index_cast %15 : i32 to index
    %c2 = arith.constant 2 : index
    %17 = memref.load %arg1[%16, %c2] : memref<2x16xi32, #tpu.memory_space<smem>>
    %18 = arith.index_cast %17 : i32 to index
    %c0_10 = arith.constant 0 : index
    %19 = vector.load %arg2[%18, %c0_10] : memref<52x32xf32, #tpu.memory_space<vmem>>, vector<1x32xf32>
    %c2_11 = arith.constant 2 : index
    %c0_12 = arith.constant 0 : index
    %20 = vector.load %arg6[%c2_11, %c0_12] : memref<32x32xf32, #tpu.memory_space<vmem>>, vector<1x32xf32>
    tpu.vector_store %arg6[%c2_11, %c0_12], %19 {strides = array<i32>} : memref<32x32xf32, #tpu.memory_space<vmem>>, vector<1x32xf32>,
    %c2_i32_13 = arith.constant 2 : i32
    %21 = arith.muli %arg0, %c2_i32_13 : i32
    %c0_i32_14 = arith.constant 0 : i32
    %22 = arith.addi %21, %c0_i32_14 : i32
    %23 = arith.index_cast %22 : i32 to index
    %c3 = arith.constant 3 : index
    %24 = memref.load %arg1[%23, %c3] : memref<2x16xi32, #tpu.memory_space<smem>>
    %25 = arith.index_cast %24 : i32 to index
    %c0_15 = arith.constant 0 : index
    %26 = vector.load %arg2[%25, %c0_15] : memref<52x32xf32, #tpu.memory_space<vmem>>, vector<1x32xf32>
    %c3_16 = arith.constant 3 : index
    %c0_17 = arith.constant 0 : index
    %27 = vector.load %arg6[%c3_16, %c0_17] : memref<32x32xf32, #tpu.memory_space<vmem>>, vector<1x32xf32>
    tpu.vector_store %arg6[%c3_16, %c0_17], %26 {strides = array<i32>} : memref<32x32xf32, #tpu.memory_space<vmem>>, vector<1x32xf32>,
    %c2_i32_18 = arith.constant 2 : i32
    %28 = arith.muli %arg0, %c2_i32_18 : i32
    %c0_i32_19 = arith.constant 0 : i32
    %29 = arith.addi %28, %c0_i32_19 : i32
    %30 = arith.index_cast %29 : i32 to index
    %c4 = arith.constant 4 : index
    %31 = memref.load %arg1[%30, %c4] : memref<2x16xi32, #tpu.memory_space<smem>>
    %32 = arith.index_cast %31 : i32 to index
    %c0_20 = arith.constant 0 : index
    %33 = vector.load %arg2[%32, %c0_20] : memref<52x32xf32, #tpu.memory_space<vmem>>, vector<1x32xf32>
    %c4_21 = arith.constant 4 : index
    %c0_22 = arith.constant 0 : index
    %34 = vector.load %arg6[%c4_21, %c0_22] : memref<32x32xf32, #tpu.memory_space<vmem>>, vector<1x32xf32>
    tpu.vector_store %arg6[%c4_21, %c0_22], %33 {strides = array<i32>} : memref<32x32xf32, #tpu.memory_space<vmem>>, vector<1x32xf32>,
    %c2_i32_23 = arith.constant 2 : i32
    %35 = arith.muli %arg0, %c2_i32_23 : i32
    %c0_i32_24 = arith.constant 0 : i32
    %36 = arith.addi %35, %c0_i32_24 : i32
    %37 = arith.index_cast %36 : i32 to index
    %c5 = arith.constant 5 : index
    %38 = memref.load %arg1[%37, %c5] : memref<2x16xi32, #tpu.memory_space<smem>>
    %39 = arith.index_cast %38 : i32 to index
    %c0_25 = arith.constant 0 : index
    %40 = vector.load %arg2[%39, %c0_25] : memref<52x32xf32, #tpu.memory_space<vmem>>, vector<1x32xf32>
    %c5_26 = arith.constant 5 : index
    %c0_27 = arith.constant 0 : index
    %41 = vector.load %arg6[%c5_26, %c0_27] : memref<32x32xf32, #tpu.memory_space<vmem>>, vector<1x32xf32>
    tpu.vector_store %arg6[%c5_26, %c0_27], %40 {strides = array<i32>} : memref<32x32xf32, #tpu.memory_space<vmem>>, vector<1x32xf32>,
    %c2_i32_28 = arith.constant 2 : i32
    %42 = arith.muli %arg0, %c2_i32_28 : i32
    %c0_i32_29 = arith.constant 0 : i32
    %43 = arith.addi %42, %c0_i32_29 : i32
    %44 = arith.index_cast %43 : i32 to index
    %c6 = arith.constant 6 : index
    %45 = memref.load %arg1[%44, %c6] : memref<2x16xi32, #tpu.memory_space<smem>>
    %46 = arith.index_cast %45 : i32 to index
    %c0_30 = arith.constant 0 : index
    %47 = vector.load %arg2[%46, %c0_30] : memref<52x32xf32, #tpu.memory_space<vmem>>, vector<1x32xf32>
    %c6_31 = arith.constant 6 : index
    %c0_32 = arith.constant 0 : index
    %48 = vector.load %arg6[%c6_31, %c0_32] : memref<32x32xf32, #tpu.memory_space<vmem>>, vector<1x32xf32>
    tpu.vector_store %arg6[%c6_31, %c0_32], %47 {strides = array<i32>} : memref<32x32xf32, #tpu.memory_space<vmem>>, vector<1x32xf32>,
    %c2_i32_33 = arith.constant 2 : i32
    %49 = arith.muli %arg0, %c2_i32_33 : i32
    %c0_i32_34 = arith.constant 0 : i32
    %50 = arith.addi %49, %c0_i32_34 : i32
    %51 = arith.index_cast %50 : i32 to index
    %c7 = arith.constant 7 : index
    %52 = memref.load %arg1[%51, %c7] : memref<2x16xi32, #tpu.memory_space<smem>>
    %53 = arith.index_cast %52 : i32 to index
    %c0_35 = arith.constant 0 : index
    %54 = vector.load %arg2[%53, %c0_35] : memref<52x32xf32, #tpu.memory_space<vmem>>, vector<1x32xf32>
    %c7_36 = arith.constant 7 : index
    %c0_37 = arith.constant 0 : index
    %55 = vector.load %arg6[%c7_36, %c0_37] : memref<32x32xf32, #tpu.memory_space<vmem>>, vector<1x32xf32>
    tpu.vector_store %arg6[%c7_36, %c0_37], %54 {strides = array<i32>} : memref<32x32xf32, #tpu.memory_space<vmem>>, vector<1x32xf32>,
    %c2_i32_38 = arith.constant 2 : i32
    %56 = arith.muli %arg0, %c2_i32_38 : i32
    %c0_i32_39 = arith.constant 0 : i32
    %57 = arith.addi %56, %c0_i32_39 : i32
    %58 = arith.index_cast %57 : i32 to index
    %c8 = arith.constant 8 : index
    %59 = memref.load %arg1[%58, %c8] : memref<2x16xi32, #tpu.memory_space<smem>>
    %60 = arith.index_cast %59 : i32 to index
    %c0_40 = arith.constant 0 : index
    %61 = vector.load %arg2[%60, %c0_40] : memref<52x32xf32, #tpu.memory_space<vmem>>, vector<1x32xf32>
    %c8_41 = arith.constant 8 : index
    %c0_42 = arith.constant 0 : index
    %62 = vector.load %arg6[%c8_41, %c0_42] : memref<32x32xf32, #tpu.memory_space<vmem>>, vector<1x32xf32>
    tpu.vector_store %arg6[%c8_41, %c0_42], %61 {strides = array<i32>} : memref<32x32xf32, #tpu.memory_space<vmem>>, vector<1x32xf32>,
    %c2_i32_43 = arith.constant 2 : i32
    %63 = arith.muli %arg0, %c2_i32_43 : i32
    %c0_i32_44 = arith.constant 0 : i32
    %64 = arith.addi %63, %c0_i32_44 : i32
    %65 = arith.index_cast %64 : i32 to index
    %c9 = arith.constant 9 : index
    %66 = memref.load %arg1[%65, %c9] : memref<2x16xi32, #tpu.memory_space<smem>>
    %67 = arith.index_cast %66 : i32 to index
    %c0_45 = arith.constant 0 : index
    %68 = vector.load %arg2[%67, %c0_45] : memref<52x32xf32, #tpu.memory_space<vmem>>, vector<1x32xf32>
    %c9_46 = arith.constant 9 : index
    %c0_47 = arith.constant 0 : index
    %69 = vector.load %arg6[%c9_46, %c0_47] : memref<32x32xf32, #tpu.memory_space<vmem>>, vector<1x32xf32>
    tpu.vector_store %arg6[%c9_46, %c0_47], %68 {strides = array<i32>} : memref<32x32xf32, #tpu.memory_space<vmem>>, vector<1x32xf32>,
    %c2_i32_48 = arith.constant 2 : i32
    %70 = arith.muli %arg0, %c2_i32_48 : i32
    %c0_i32_49 = arith.constant 0 : i32
    %71 = arith.addi %70, %c0_i32_49 : i32
    %72 = arith.index_cast %71 : i32 to index
    %c10 = arith.constant 10 : index
    %73 = memref.load %arg1[%72, %c10] : memref<2x16xi32, #tpu.memory_space<smem>>
    %74 = arith.index_cast %73 : i32 to index
    %c0_50 = arith.constant 0 : index
    %75 = vector.load %arg2[%74, %c0_50] : memref<52x32xf32, #tpu.memory_space<vmem>>, vector<1x32xf32>
    %c10_51 = arith.constant 10 : index
    %c0_52 = arith.constant 0 : index
    %76 = vector.load %arg6[%c10_51, %c0_52] : memref<32x32xf32, #tpu.memory_space<vmem>>, vector<1x32xf32>
    tpu.vector_store %arg6[%c10_51, %c0_52], %75 {strides = array<i32>} : memref<32x32xf32, #tpu.memory_space<vmem>>, vector<1x32xf32>,
    %c2_i32_53 = arith.constant 2 : i32
    %77 = arith.muli %arg0, %c2_i32_53 : i32
    %c0_i32_54 = arith.constant 0 : i32
    %78 = arith.addi %77, %c0_i32_54 : i32
    %79 = arith.index_cast %78 : i32 to index
    %c11 = arith.constant 11 : index
    %80 = memref.load %arg1[%79, %c11] : memref<2x16xi32, #tpu.memory_space<smem>>
    %81 = arith.index_cast %80 : i32 to index
    %c0_55 = arith.constant 0 : index
    %82 = vector.load %arg2[%81, %c0_55] : memref<52x32xf32, #tpu.memory_space<vmem>>, vector<1x32xf32>
    %c11_56 = arith.constant 11 : index
    %c0_57 = arith.constant 0 : index
    %83 = vector.load %arg6[%c11_56, %c0_57] : memref<32x32xf32, #tpu.memory_space<vmem>>, vector<1x32xf32>
    tpu.vector_store %arg6[%c11_56, %c0_57], %82 {strides = array<i32>} : memref<32x32xf32, #tpu.memory_space<vmem>>, vector<1x32xf32>,
    %c2_i32_58 = arith.constant 2 : i32
    %84 = arith.muli %arg0, %c2_i32_58 : i32
    %c0_i32_59 = arith.constant 0 : i32
    %85 = arith.addi %84, %c0_i32_59 : i32
    %86 = arith.index_cast %85 : i32 to index
    %c12 = arith.constant 12 : index
    %87 = memref.load %arg1[%86, %c12] : memref<2x16xi32, #tpu.memory_space<smem>>
    %88 = arith.index_cast %87 : i32 to index
    %c0_60 = arith.constant 0 : index
    %89 = vector.load %arg2[%88, %c0_60] : memref<52x32xf32, #tpu.memory_space<vmem>>, vector<1x32xf32>
    %c12_61 = arith.constant 12 : index
    %c0_62 = arith.constant 0 : index
    %90 = vector.load %arg6[%c12_61, %c0_62] : memref<32x32xf32, #tpu.memory_space<vmem>>, vector<1x32xf32>
    tpu.vector_store %arg6[%c12_61, %c0_62], %89 {strides = array<i32>} : memref<32x32xf32, #tpu.memory_space<vmem>>, vector<1x32xf32>,
    %c2_i32_63 = arith.constant 2 : i32
    %91 = arith.muli %arg0, %c2_i32_63 : i32
    %c0_i32_64 = arith.constant 0 : i32
    %92 = arith.addi %91, %c0_i32_64 : i32
    %93 = arith.index_cast %92 : i32 to index
    %c13 = arith.constant 13 : index
    %94 = memref.load %arg1[%93, %c13] : memref<2x16xi32, #tpu.memory_space<smem>>
    %95 = arith.index_cast %94 : i32 to index
    %c0_65 = arith.constant 0 : index
    %96 = vector.load %arg2[%95, %c0_65] : memref<52x32xf32, #tpu.memory_space<vmem>>, vector<1x32xf32>
    %c13_66 = arith.constant 13 : index
    %c0_67 = arith.constant 0 : index
    %97 = vector.load %arg6[%c13_66, %c0_67] : memref<32x32xf32, #tpu.memory_space<vmem>>, vector<1x32xf32>
    tpu.vector_store %arg6[%c13_66, %c0_67], %96 {strides = array<i32>} : memref<32x32xf32, #tpu.memory_space<vmem>>, vector<1x32xf32>,
    %c2_i32_68 = arith.constant 2 : i32
    %98 = arith.muli %arg0, %c2_i32_68 : i32
    %c0_i32_69 = arith.constant 0 : i32
    %99 = arith.addi %98, %c0_i32_69 : i32
    %100 = arith.index_cast %99 : i32 to index
    %c14 = arith.constant 14 : index
    %101 = memref.load %arg1[%100, %c14] : memref<2x16xi32, #tpu.memory_space<smem>>
    %102 = arith.index_cast %101 : i32 to index
    %c0_70 = arith.constant 0 : index
    %103 = vector.load %arg2[%102, %c0_70] : memref<52x32xf32, #tpu.memory_space<vmem>>, vector<1x32xf32>
    %c14_71 = arith.constant 14 : index
    %c0_72 = arith.constant 0 : index
    %104 = vector.load %arg6[%c14_71, %c0_72] : memref<32x32xf32, #tpu.memory_space<vmem>>, vector<1x32xf32>
    tpu.vector_store %arg6[%c14_71, %c0_72], %103 {strides = array<i32>} : memref<32x32xf32, #tpu.memory_space<vmem>>, vector<1x32xf32>,
    %c2_i32_73 = arith.constant 2 : i32
    %105 = arith.muli %arg0, %c2_i32_73 : i32
    %c0_i32_74 = arith.constant 0 : i32
    %106 = arith.addi %105, %c0_i32_74 : i32
    %107 = arith.index_cast %106 : i32 to index
    %c15 = arith.constant 15 : index
    %108 = memref.load %arg1[%107, %c15] : memref<2x16xi32, #tpu.memory_space<smem>>
    %109 = arith.index_cast %108 : i32 to index
    %c0_75 = arith.constant 0 : index
    %110 = vector.load %arg2[%109, %c0_75] : memref<52x32xf32, #tpu.memory_space<vmem>>, vector<1x32xf32>
    %c15_76 = arith.constant 15 : index
    %c0_77 = arith.constant 0 : index
    %111 = vector.load %arg6[%c15_76, %c0_77] : memref<32x32xf32, #tpu.memory_space<vmem>>, vector<1x32xf32>
    tpu.vector_store %arg6[%c15_76, %c0_77], %110 {strides = array<i32>} : memref<32x32xf32, #tpu.memory_space<vmem>>, vector<1x32xf32>,
    %c2_i32_78 = arith.constant 2 : i32
    %112 = arith.muli %arg0, %c2_i32_78 : i32
    %c1_i32 = arith.constant 1 : i32
    %113 = arith.addi %112, %c1_i32 : i32
    %114 = arith.index_cast %113 : i32 to index
    %c0_79 = arith.constant 0 : index
    %115 = memref.load %arg1[%114, %c0_79] : memref<2x16xi32, #tpu.memory_space<smem>>
    %116 = arith.index_cast %115 : i32 to index
    %c0_80 = arith.constant 0 : index
    %117 = vector.load %arg2[%116, %c0_80] : memref<52x32xf32, #tpu.memory_space<vmem>>, vector<1x32xf32>
    %c16 = arith.constant 16 : index
    %c0_81 = arith.constant 0 : index
    %118 = vector.load %arg6[%c16, %c0_81] : memref<32x32xf32, #tpu.memory_space<vmem>>, vector<1x32xf32>
    tpu.vector_store %arg6[%c16, %c0_81], %117 {strides = array<i32>} : memref<32x32xf32, #tpu.memory_space<vmem>>, vector<1x32xf32>,
    %c2_i32_82 = arith.constant 2 : i32
    %119 = arith.muli %arg0, %c2_i32_82 : i32
    %c1_i32_83 = arith.constant 1 : i32
    %120 = arith.addi %119, %c1_i32_83 : i32
    %121 = arith.index_cast %120 : i32 to index
    %c1_84 = arith.constant 1 : index
    %122 = memref.load %arg1[%121, %c1_84] : memref<2x16xi32, #tpu.memory_space<smem>>
    %123 = arith.index_cast %122 : i32 to index
    %c0_85 = arith.constant 0 : index
    %124 = vector.load %arg2[%123, %c0_85] : memref<52x32xf32, #tpu.memory_space<vmem>>, vector<1x32xf32>
    %c17 = arith.constant 17 : index
    %c0_86 = arith.constant 0 : index
    %125 = vector.load %arg6[%c17, %c0_86] : memref<32x32xf32, #tpu.memory_space<vmem>>, vector<1x32xf32>
    tpu.vector_store %arg6[%c17, %c0_86], %124 {strides = array<i32>} : memref<32x32xf32, #tpu.memory_space<vmem>>, vector<1x32xf32>,
    %c2_i32_87 = arith.constant 2 : i32
    %126 = arith.muli %arg0, %c2_i32_87 : i32
    %c1_i32_88 = arith.constant 1 : i32
    %127 = arith.addi %126, %c1_i32_88 : i32
    %128 = arith.index_cast %127 : i32 to index
    %c2_89 = arith.constant 2 : index
    %129 = memref.load %arg1[%128, %c2_89] : memref<2x16xi32, #tpu.memory_space<smem>>
    %130 = arith.index_cast %129 : i32 to index
    %c0_90 = arith.constant 0 : index
    %131 = vector.load %arg2[%130, %c0_90] : memref<52x32xf32, #tpu.memory_space<vmem>>, vector<1x32xf32>
    %c18 = arith.constant 18 : index
    %c0_91 = arith.constant 0 : index
    %132 = vector.load %arg6[%c18, %c0_91] : memref<32x32xf32, #tpu.memory_space<vmem>>, vector<1x32xf32>
    tpu.vector_store %arg6[%c18, %c0_91], %131 {strides = array<i32>} : memref<32x32xf32, #tpu.memory_space<vmem>>, vector<1x32xf32>,
    %c2_i32_92 = arith.constant 2 : i32
    %133 = arith.muli %arg0, %c2_i32_92 : i32
    %c1_i32_93 = arith.constant 1 : i32
    %134 = arith.addi %133, %c1_i32_93 : i32
    %135 = arith.index_cast %134 : i32 to index
    %c3_94 = arith.constant 3 : index
    %136 = memref.load %arg1[%135, %c3_94] : memref<2x16xi32, #tpu.memory_space<smem>>
    %137 = arith.index_cast %136 : i32 to index
    %c0_95 = arith.constant 0 : index
    %138 = vector.load %arg2[%137, %c0_95] : memref<52x32xf32, #tpu.memory_space<vmem>>, vector<1x32xf32>
    %c19 = arith.constant 19 : index
    %c0_96 = arith.constant 0 : index
    %139 = vector.load %arg6[%c19, %c0_96] : memref<32x32xf32, #tpu.memory_space<vmem>>, vector<1x32xf32>
    tpu.vector_store %arg6[%c19, %c0_96], %138 {strides = array<i32>} : memref<32x32xf32, #tpu.memory_space<vmem>>, vector<1x32xf32>,
    %c2_i32_97 = arith.constant 2 : i32
    %140 = arith.muli %arg0, %c2_i32_97 : i32
    %c1_i32_98 = arith.constant 1 : i32
    %141 = arith.addi %140, %c1_i32_98 : i32
    %142 = arith.index_cast %141 : i32 to index
    %c4_99 = arith.constant 4 : index
    %143 = memref.load %arg1[%142, %c4_99] : memref<2x16xi32, #tpu.memory_space<smem>>
    %144 = arith.index_cast %143 : i32 to index
    %c0_100 = arith.constant 0 : index
    %145 = vector.load %arg2[%144, %c0_100] : memref<52x32xf32, #tpu.memory_space<vmem>>, vector<1x32xf32>
    %c20 = arith.constant 20 : index
    %c0_101 = arith.constant 0 : index
    %146 = vector.load %arg6[%c20, %c0_101] : memref<32x32xf32, #tpu.memory_space<vmem>>, vector<1x32xf32>
    tpu.vector_store %arg6[%c20, %c0_101], %145 {strides = array<i32>} : memref<32x32xf32, #tpu.memory_space<vmem>>, vector<1x32xf32>,
    %c2_i32_102 = arith.constant 2 : i32
    %147 = arith.muli %arg0, %c2_i32_102 : i32
    %c1_i32_103 = arith.constant 1 : i32
    %148 = arith.addi %147, %c1_i32_103 : i32
    %149 = arith.index_cast %148 : i32 to index
    %c5_104 = arith.constant 5 : index
    %150 = memref.load %arg1[%149, %c5_104] : memref<2x16xi32, #tpu.memory_space<smem>>
    %151 = arith.index_cast %150 : i32 to index
    %c0_105 = arith.constant 0 : index
    %152 = vector.load %arg2[%151, %c0_105] : memref<52x32xf32, #tpu.memory_space<vmem>>, vector<1x32xf32>
    %c21 = arith.constant 21 : index
    %c0_106 = arith.constant 0 : index
    %153 = vector.load %arg6[%c21, %c0_106] : memref<32x32xf32, #tpu.memory_space<vmem>>, vector<1x32xf32>
    tpu.vector_store %arg6[%c21, %c0_106], %152 {strides = array<i32>} : memref<32x32xf32, #tpu.memory_space<vmem>>, vector<1x32xf32>,
    %c2_i32_107 = arith.constant 2 : i32
    %154 = arith.muli %arg0, %c2_i32_107 : i32
    %c1_i32_108 = arith.constant 1 : i32
    %155 = arith.addi %154, %c1_i32_108 : i32
    %156 = arith.index_cast %155 : i32 to index
    %c6_109 = arith.constant 6 : index
    %157 = memref.load %arg1[%156, %c6_109] : memref<2x16xi32, #tpu.memory_space<smem>>
    %158 = arith.index_cast %157 : i32 to index
    %c0_110 = arith.constant 0 : index
    %159 = vector.load %arg2[%158, %c0_110] : memref<52x32xf32, #tpu.memory_space<vmem>>, vector<1x32xf32>
    %c22 = arith.constant 22 : index
    %c0_111 = arith.constant 0 : index
    %160 = vector.load %arg6[%c22, %c0_111] : memref<32x32xf32, #tpu.memory_space<vmem>>, vector<1x32xf32>
    tpu.vector_store %arg6[%c22, %c0_111], %159 {strides = array<i32>} : memref<32x32xf32, #tpu.memory_space<vmem>>, vector<1x32xf32>,
    %c2_i32_112 = arith.constant 2 : i32
    %161 = arith.muli %arg0, %c2_i32_112 : i32
    %c1_i32_113 = arith.constant 1 : i32
    %162 = arith.addi %161, %c1_i32_113 : i32
    %163 = arith.index_cast %162 : i32 to index
    %c7_114 = arith.constant 7 : index
    %164 = memref.load %arg1[%163, %c7_114] : memref<2x16xi32, #tpu.memory_space<smem>>
    %165 = arith.index_cast %164 : i32 to index
    %c0_115 = arith.constant 0 : index
    %166 = vector.load %arg2[%165, %c0_115] : memref<52x32xf32, #tpu.memory_space<vmem>>, vector<1x32xf32>
    %c23 = arith.constant 23 : index
    %c0_116 = arith.constant 0 : index
    %167 = vector.load %arg6[%c23, %c0_116] : memref<32x32xf32, #tpu.memory_space<vmem>>, vector<1x32xf32>
    tpu.vector_store %arg6[%c23, %c0_116], %166 {strides = array<i32>} : memref<32x32xf32, #tpu.memory_space<vmem>>, vector<1x32xf32>,
    %c2_i32_117 = arith.constant 2 : i32
    %168 = arith.muli %arg0, %c2_i32_117 : i32
    %c1_i32_118 = arith.constant 1 : i32
    %169 = arith.addi %168, %c1_i32_118 : i32
    %170 = arith.index_cast %169 : i32 to index
    %c8_119 = arith.constant 8 : index
    %171 = memref.load %arg1[%170, %c8_119] : memref<2x16xi32, #tpu.memory_space<smem>>
    %172 = arith.index_cast %171 : i32 to index
    %c0_120 = arith.constant 0 : index
    %173 = vector.load %arg2[%172, %c0_120] : memref<52x32xf32, #tpu.memory_space<vmem>>, vector<1x32xf32>
    %c24 = arith.constant 24 : index
    %c0_121 = arith.constant 0 : index
    %174 = vector.load %arg6[%c24, %c0_121] : memref<32x32xf32, #tpu.memory_space<vmem>>, vector<1x32xf32>
    tpu.vector_store %arg6[%c24, %c0_121], %173 {strides = array<i32>} : memref<32x32xf32, #tpu.memory_space<vmem>>, vector<1x32xf32>,
    %c2_i32_122 = arith.constant 2 : i32
    %175 = arith.muli %arg0, %c2_i32_122 : i32
    %c1_i32_123 = arith.constant 1 : i32
    %176 = arith.addi %175, %c1_i32_123 : i32
    %177 = arith.index_cast %176 : i32 to index
    %c9_124 = arith.constant 9 : index
    %178 = memref.load %arg1[%177, %c9_124] : memref<2x16xi32, #tpu.memory_space<smem>>
    %179 = arith.index_cast %178 : i32 to index
    %c0_125 = arith.constant 0 : index
    %180 = vector.load %arg2[%179, %c0_125] : memref<52x32xf32, #tpu.memory_space<vmem>>, vector<1x32xf32>
    %c25 = arith.constant 25 : index
    %c0_126 = arith.constant 0 : index
    %181 = vector.load %arg6[%c25, %c0_126] : memref<32x32xf32, #tpu.memory_space<vmem>>, vector<1x32xf32>
    tpu.vector_store %arg6[%c25, %c0_126], %180 {strides = array<i32>} : memref<32x32xf32, #tpu.memory_space<vmem>>, vector<1x32xf32>,
    %c2_i32_127 = arith.constant 2 : i32
    %182 = arith.muli %arg0, %c2_i32_127 : i32
    %c1_i32_128 = arith.constant 1 : i32
    %183 = arith.addi %182, %c1_i32_128 : i32
    %184 = arith.index_cast %183 : i32 to index
    %c10_129 = arith.constant 10 : index
    %185 = memref.load %arg1[%184, %c10_129] : memref<2x16xi32, #tpu.memory_space<smem>>
    %186 = arith.index_cast %185 : i32 to index
    %c0_130 = arith.constant 0 : index
    %187 = vector.load %arg2[%186, %c0_130] : memref<52x32xf32, #tpu.memory_space<vmem>>, vector<1x32xf32>
    %c26 = arith.constant 26 : index
    %c0_131 = arith.constant 0 : index
    %188 = vector.load %arg6[%c26, %c0_131] : memref<32x32xf32, #tpu.memory_space<vmem>>, vector<1x32xf32>
    tpu.vector_store %arg6[%c26, %c0_131], %187 {strides = array<i32>} : memref<32x32xf32, #tpu.memory_space<vmem>>, vector<1x32xf32>,
    %c2_i32_132 = arith.constant 2 : i32
    %189 = arith.muli %arg0, %c2_i32_132 : i32
    %c1_i32_133 = arith.constant 1 : i32
    %190 = arith.addi %189, %c1_i32_133 : i32
    %191 = arith.index_cast %190 : i32 to index
    %c11_134 = arith.constant 11 : index
    %192 = memref.load %arg1[%191, %c11_134] : memref<2x16xi32, #tpu.memory_space<smem>>
    %193 = arith.index_cast %192 : i32 to index
    %c0_135 = arith.constant 0 : index
    %194 = vector.load %arg2[%193, %c0_135] : memref<52x32xf32, #tpu.memory_space<vmem>>, vector<1x32xf32>
    %c27 = arith.constant 27 : index
    %c0_136 = arith.constant 0 : index
    %195 = vector.load %arg6[%c27, %c0_136] : memref<32x32xf32, #tpu.memory_space<vmem>>, vector<1x32xf32>
    tpu.vector_store %arg6[%c27, %c0_136], %194 {strides = array<i32>} : memref<32x32xf32, #tpu.memory_space<vmem>>, vector<1x32xf32>,
    %c2_i32_137 = arith.constant 2 : i32
    %196 = arith.muli %arg0, %c2_i32_137 : i32
    %c1_i32_138 = arith.constant 1 : i32
    %197 = arith.addi %196, %c1_i32_138 : i32
    %198 = arith.index_cast %197 : i32 to index
    %c12_139 = arith.constant 12 : index
    %199 = memref.load %arg1[%198, %c12_139] : memref<2x16xi32, #tpu.memory_space<smem>>
    %200 = arith.index_cast %199 : i32 to index
    %c0_140 = arith.constant 0 : index
    %201 = vector.load %arg2[%200, %c0_140] : memref<52x32xf32, #tpu.memory_space<vmem>>, vector<1x32xf32>
    %c28 = arith.constant 28 : index
    %c0_141 = arith.constant 0 : index
    %202 = vector.load %arg6[%c28, %c0_141] : memref<32x32xf32, #tpu.memory_space<vmem>>, vector<1x32xf32>
    tpu.vector_store %arg6[%c28, %c0_141], %201 {strides = array<i32>} : memref<32x32xf32, #tpu.memory_space<vmem>>, vector<1x32xf32>,
    %c2_i32_142 = arith.constant 2 : i32
    %203 = arith.muli %arg0, %c2_i32_142 : i32
    %c1_i32_143 = arith.constant 1 : i32
    %204 = arith.addi %203, %c1_i32_143 : i32
    %205 = arith.index_cast %204 : i32 to index
    %c13_144 = arith.constant 13 : index
    %206 = memref.load %arg1[%205, %c13_144] : memref<2x16xi32, #tpu.memory_space<smem>>
    %207 = arith.index_cast %206 : i32 to index
    %c0_145 = arith.constant 0 : index
    %208 = vector.load %arg2[%207, %c0_145] : memref<52x32xf32, #tpu.memory_space<vmem>>, vector<1x32xf32>
    %c29 = arith.constant 29 : index
    %c0_146 = arith.constant 0 : index
    %209 = vector.load %arg6[%c29, %c0_146] : memref<32x32xf32, #tpu.memory_space<vmem>>, vector<1x32xf32>
    tpu.vector_store %arg6[%c29, %c0_146], %208 {strides = array<i32>} : memref<32x32xf32, #tpu.memory_space<vmem>>, vector<1x32xf32>,
    %c2_i32_147 = arith.constant 2 : i32
    %210 = arith.muli %arg0, %c2_i32_147 : i32
    %c1_i32_148 = arith.constant 1 : i32
    %211 = arith.addi %210, %c1_i32_148 : i32
    %212 = arith.index_cast %211 : i32 to index
    %c14_149 = arith.constant 14 : index
    %213 = memref.load %arg1[%212, %c14_149] : memref<2x16xi32, #tpu.memory_space<smem>>
    %214 = arith.index_cast %213 : i32 to index
    %c0_150 = arith.constant 0 : index
    %215 = vector.load %arg2[%214, %c0_150] : memref<52x32xf32, #tpu.memory_space<vmem>>, vector<1x32xf32>
    %c30 = arith.constant 30 : index
    %c0_151 = arith.constant 0 : index
    %216 = vector.load %arg6[%c30, %c0_151] : memref<32x32xf32, #tpu.memory_space<vmem>>, vector<1x32xf32>
    tpu.vector_store %arg6[%c30, %c0_151], %215 {strides = array<i32>} : memref<32x32xf32, #tpu.memory_space<vmem>>, vector<1x32xf32>,
    %c2_i32_152 = arith.constant 2 : i32
    %217 = arith.muli %arg0, %c2_i32_152 : i32
    %c1_i32_153 = arith.constant 1 : i32
    %218 = arith.addi %217, %c1_i32_153 : i32
    %219 = arith.index_cast %218 : i32 to index
    %c15_154 = arith.constant 15 : index
    %220 = memref.load %arg1[%219, %c15_154] : memref<2x16xi32, #tpu.memory_space<smem>>
    %221 = arith.index_cast %220 : i32 to index
    %c0_155 = arith.constant 0 : index
    %222 = vector.load %arg2[%221, %c0_155] : memref<52x32xf32, #tpu.memory_space<vmem>>, vector<1x32xf32>
    %c31 = arith.constant 31 : index
    %c0_156 = arith.constant 0 : index
    %223 = vector.load %arg6[%c31, %c0_156] : memref<32x32xf32, #tpu.memory_space<vmem>>, vector<1x32xf32>
    tpu.vector_store %arg6[%c31, %c0_156], %222 {strides = array<i32>} : memref<32x32xf32, #tpu.memory_space<vmem>>, vector<1x32xf32>,
    %c0_157 = arith.constant 0 : index
    %c0_158 = arith.constant 0 : index
    %224 = vector.load %arg6[%c0_157, %c0_158] : memref<32x32xf32, #tpu.memory_space<vmem>>, vector<14x32xf32>
    %c0_159 = arith.constant 0 : index
    %c0_160 = arith.constant 0 : index
    %225 = vector.load %arg7[%c0_159, %c0_160] : memref<28x96xf32, #tpu.memory_space<vmem>>, vector<14x32xf32>
    tpu.vector_store %arg7[%c0_159, %c0_160], %224 {strides = array<i32>} : memref<28x96xf32, #tpu.memory_space<vmem>>, vector<14x32xf32>,
    %c1_161 = arith.constant 1 : index
    %c0_162 = arith.constant 0 : index
    %226 = vector.load %arg6[%c1_161, %c0_162] : memref<32x32xf32, #tpu.memory_space<vmem>>, vector<14x32xf32>
    %c0_163 = arith.constant 0 : index
    %c32 = arith.constant 32 : index
    %227 = vector.load %arg7[%c0_163, %c32] : memref<28x96xf32, #tpu.memory_space<vmem>>, vector<14x32xf32>
    tpu.vector_store %arg7[%c0_163, %c32], %226 {strides = array<i32>} : memref<28x96xf32, #tpu.memory_space<vmem>>, vector<14x32xf32>,
    %c2_164 = arith.constant 2 : index
    %c0_165 = arith.constant 0 : index
    %228 = vector.load %arg6[%c2_164, %c0_165] : memref<32x32xf32, #tpu.memory_space<vmem>>, vector<14x32xf32>
    %c0_166 = arith.constant 0 : index
    %c64 = arith.constant 64 : index
    %229 = vector.load %arg7[%c0_166, %c64] : memref<28x96xf32, #tpu.memory_space<vmem>>, vector<14x32xf32>
    tpu.vector_store %arg7[%c0_166, %c64], %228 {strides = array<i32>} : memref<28x96xf32, #tpu.memory_space<vmem>>, vector<14x32xf32>,
    %c16_167 = arith.constant 16 : index
    %c0_168 = arith.constant 0 : index
    %230 = vector.load %arg6[%c16_167, %c0_168] : memref<32x32xf32, #tpu.memory_space<vmem>>, vector<14x32xf32>
    %c14_169 = arith.constant 14 : index
    %c0_170 = arith.constant 0 : index
    %231 = vector.load %arg7[%c14_169, %c0_170] : memref<28x96xf32, #tpu.memory_space<vmem>>, vector<14x32xf32>
    tpu.vector_store %arg7[%c14_169, %c0_170], %230 {strides = array<i32>} : memref<28x96xf32, #tpu.memory_space<vmem>>, vector<14x32xf32>,
    %c17_171 = arith.constant 17 : index
    %c0_172 = arith.constant 0 : index
    %232 = vector.load %arg6[%c17_171, %c0_172] : memref<32x32xf32, #tpu.memory_space<vmem>>, vector<14x32xf32>
    %c14_173 = arith.constant 14 : index
    %c32_174 = arith.constant 32 : index
    %233 = vector.load %arg7[%c14_173, %c32_174] : memref<28x96xf32, #tpu.memory_space<vmem>>, vector<14x32xf32>
    tpu.vector_store %arg7[%c14_173, %c32_174], %232 {strides = array<i32>} : memref<28x96xf32, #tpu.memory_space<vmem>>, vector<14x32xf32>,
    %c18_175 = arith.constant 18 : index
    %c0_176 = arith.constant 0 : index
    %234 = vector.load %arg6[%c18_175, %c0_176] : memref<32x32xf32, #tpu.memory_space<vmem>>, vector<14x32xf32>
    %c14_177 = arith.constant 14 : index
    %c64_178 = arith.constant 64 : index
    %235 = vector.load %arg7[%c14_177, %c64_178] : memref<28x96xf32, #tpu.memory_space<vmem>>, vector<14x32xf32>
    tpu.vector_store %arg7[%c14_177, %c64_178], %234 {strides = array<i32>} : memref<28x96xf32, #tpu.memory_space<vmem>>, vector<14x32xf32>,
    %c0_179 = arith.constant 0 : index
    %c0_180 = arith.constant 0 : index
    %236 = vector.load %arg7[%c0_179, %c0_180] : memref<28x96xf32, #tpu.memory_space<vmem>>, vector<28x96xf32>
    %237 = arith.truncf %236 : vector<28x96xf32> to vector<28x96xbf16>
    %c0_181 = arith.constant 0 : index
    %c0_182 = arith.constant 0 : index
    %238 = vector.load %arg3[%c0_181, %c0_182] : memref<96x16xbf16, #tpu.memory_space<vmem>>, vector<96x16xbf16>
    %cst = arith.constant dense<0.000000e+00> : vector<28x16xf32>
    %239 = tpu.matmul %237, %238, %cst {dimension_numbers = #tpu.dot_dimension_numbers<[1], [0], [0], [1], [0, 0, 1, 1], [], []>} : vector<28x96xbf16>, vector<96x16xbf16>, vector<28x16xf32> -> vector<28x16xf32>
    %c0_183 = arith.constant 0 : index
    %c0_184 = arith.constant 0 : index
    %240 = vector.load %arg4[%c0_183, %c0_184] : memref<1x16xf32, #tpu.memory_space<vmem>>, vector<1x16xf32>
    %241 = vector.broadcast %240 : vector<1x16xf32> to vector<28x16xf32>
    %242 = arith.addf %239, %241 : vector<28x16xf32>
    %243 = math.tanh %242 : vector<28x16xf32>
    %244 = vector.extract_strided_slice %243 {offsets = [0, 0], sizes = [14, 16], strides = [1, 1]} : vector<28x16xf32> to vector<14x16xf32>
    %cst_185 = arith.constant dense<0xFF800000> : vector<16xf32>
    %245 = vector.multi_reduction <maximumf>, %244, %cst_185 [0] : vector<14x16xf32> to vector<16xf32>
    %246 = vector.shape_cast %245 : vector<16xf32> to vector<1x16xf32>
    %247 = vector.extract_strided_slice %243 {offsets = [14, 0], sizes = [14, 16], strides = [1, 1]} : vector<28x16xf32> to vector<14x16xf32>
    %cst_186 = arith.constant dense<0xFF800000> : vector<16xf32>
    %248 = vector.multi_reduction <maximumf>, %247, %cst_186 [0] : vector<14x16xf32> to vector<16xf32>
    %249 = vector.shape_cast %248 : vector<16xf32> to vector<1x16xf32>
    %250 = tpu.concatenate %246, %249 in 0 : vector<1x16xf32>, vector<1x16xf32> -> vector<2x16xf32>
    %c0_187 = arith.constant 0 : index
    %c0_188 = arith.constant 0 : index
    %251 = vector.load %arg5[%c0_187, %c0_188] : memref<2x16xf32, #tpu.memory_space<vmem>>, vector<2x16xf32>
    tpu.vector_store %arg5[%c0_187, %c0_188], %250 {strides = array<i32>} : memref<2x16xf32, #tpu.memory_space<vmem>>, vector<2x16xf32>,
    return
  }
  func.func @transform_0(%arg0: i32, %arg1: memref<2x16xi32, #tpu.memory_space<smem>>) -> (i32, i32) {
    %c0_i32 = arith.constant 0 : i32
    %c0_i32_0 = arith.constant 0 : i32
    %c0_i32_1 = arith.constant 0 : i32
    return %c0_i32, %c0_i32_0 : i32, i32
  }
  func.func @transform_1(%arg0: i32, %arg1: memref<2x16xi32, #tpu.memory_space<smem>>) -> (i32, i32) {
    %c0_i32 = arith.constant 0 : i32
    %c0_i32_0 = arith.constant 0 : i32
    %c0_i32_1 = arith.constant 0 : i32
    return %c0_i32, %c0_i32_0 : i32, i32
  }
  func.func @transform_2(%arg0: i32, %arg1: memref<2x16xi32, #tpu.memory_space<smem>>) -> (i32, i32) {
    %c0_i32 = arith.constant 0 : i32
    %c0_i32_0 = arith.constant 0 : i32
    %c0_i32_1 = arith.constant 0 : i32
    return %c0_i32, %c0_i32_0 : i32, i32
  }
  func.func @transform_3(%arg0: i32, %arg1: memref<2x16xi32, #tpu.memory_space<smem>>) -> (i32, i32) {
    %c0_i32 = arith.constant 0 : i32
    %c0_i32_0 = arith.constant 0 : i32
    return %arg0, %c0_i32 : i32, i32
  }
}

</mosaic_0001>

<llo_original>
// kernel: tpu_custom_call.1
$region0: #{tpu_custom_call.1}
  #allocation0 [shape = 'u32[]', space=smem, size = 0x4, offset = 0x4, fixed_abs, tag = 'smem constant byte address 0x4 - core index']
  #allocation1 [shape = 'u32[144,128]{1,0:T(1,128)}', space=vmem, size = 0x12000, scoped, tag = 'internal scratch']
  #allocation2 [shape = 'f32[32,32]{1,0:T(8,128)}', space=vmem, size = 0x4000, scoped, tag = 'scratch operand']
  #allocation3 [shape = 'f32[28,96]{1,0:T(8,128)}', space=vmem, size = 0x4000, scoped, tag = 'scratch operand']
  #allocation4 [shape = 's32[1]{0}', space=sflag, size = 0x4, scoped, tag = 'scoped memory for tpu_custom_call.1']
  #allocation5 [shape = 'u8[1024]{0}', space=smem, size = 0x400, scoped, tag = 'prefetched SMEM operand 0']
  %s0 = inlined_call_operand.vmem [shape: s32[2,16], index: 0, kind: input, shape index: {}]
  %s1 = inlined_call_operand.vmem [shape: f32[52,32], index: 1, kind: input, shape index: {}]
  %s2 = inlined_call_operand.vmem [shape: bf16[96,16], index: 2, kind: input, shape index: {}]
  %s3 = inlined_call_operand.vmem [shape: f32[1,16], index: 3, kind: input, shape index: {}]
  %s4 = inlined_call_operand.hbm [shape: f32[2,16], index: 4, kind: output, shape index: {}]
  %s5 = sld [smem:[#allocation0]]
  $region22: #{tpu_custom_call.1} parent=0
    _
  %s7 = ssub.s32 1, %s5
  %s8 = scalar_select 0, %s7, %s5
  %s9 = sshll.u32 %s0, 4
  %s10 = int_to_ptr.vmem [resolvable:$true] %s9
  %12 = dma.vmem_to_smem %s10, 32, [#allocation5], [#allocation4]
  %13 = dma.done [#allocation4], 32
  %14 = sfence
  $region1: #{tpu_custom_call.1} parent=0
    #allocation6 [shape = 'u8[1024]{0}', space=vmem, size = 0x400, scoped, tag = 'output window, operand 0, single buffered']
    #allocation7 [shape = 's32[1]{0}', space=sflag, size = 0x4, scoped, tag = 'scoped memory for tpu_custom_call.1']
    %15 = vsyncpa [#allocation7], 0
    // Predicated region
    $region2: #{tpu_custom_call.1} parent=1 // pred_check
      _
    $region3: #{tpu_custom_call.1} parent=1 // pred_check_branch
      %17 = sbr.rel (0) target = $region5
    $region4: #{tpu_custom_call.1} parent=1 // pred_region
      _
    $region5: #{tpu_custom_call.1} parent=1 // pred_fallthru
      _
    // Predicated region
    $region6: #{tpu_custom_call.1} parent=1 // pred_check
      _
    $region7: #{tpu_custom_call.1} parent=1 // pred_check_branch
      %19 = sbr.rel (0) target = $region9
    $region8: #{tpu_custom_call.1} parent=1 // pred_region
      _
    $region9: #{tpu_custom_call.1} parent=1 // pred_fallthru
      _
    // Predicated region
    $region10: #{tpu_custom_call.1} parent=1 // pred_check
      _
    $region11: #{tpu_custom_call.1} parent=1 // pred_check_branch
      %21 = sbr.rel (0) target = $region13
    $region12: #{tpu_custom_call.1} parent=1 // pred_region
      _
    $region13: #{tpu_custom_call.1} parent=1 // pred_fallthru
      _
    %s23 = smul.u32 0, 2
    %s24 = smul.u32 %s23, 128
    %s25 = sld [smem:[#allocation5 + %s24]]
    %s26 = scalar_lea.vmem %s1, %s25
    %v27 = vld [vmem:[%s26] sm:$0x1]
    %vm28 = vcmask 253952
    %29 = vst.msk [vmem:[#allocation2] sm:$0x1] %vm28, %v27
    %s30 = sadd.s32 %s24, 1
    %s31 = sld [smem:[#allocation5 + %s30]]
    %s32 = scalar_lea.vmem %s1, %s31
    %v33 = vld [vmem:[%s32] sm:$0x1]
    %34 = vst.msk [vmem:[#allocation2 + $0x1] sm:$0x1] %vm28, %v33
    %s35 = sadd.s32 %s24, 2
    %s36 = sld [smem:[#allocation5 + %s35]]
    %s37 = scalar_lea.vmem %s1, %s36
    %v38 = vld [vmem:[%s37] sm:$0x1]
    %39 = vst.msk [vmem:[#allocation2 + $0x2] sm:$0x1] %vm28, %v38
    %s40 = sadd.s32 %s24, 3
    %s41 = sld [smem:[#allocation5 + %s40]]
    %s42 = scalar_lea.vmem %s1, %s41
    %v43 = vld [vmem:[%s42] sm:$0x1]
    %44 = vst.msk [vmem:[#allocation2 + $0x3] sm:$0x1] %vm28, %v43
    %s45 = sadd.s32 %s24, 4
    %s46 = sld [smem:[#allocation5 + %s45]]
    %s47 = scalar_lea.vmem %s1, %s46
    %v48 = vld [vmem:[%s47] sm:$0x1]
    %49 = vst.msk [vmem:[#allocation2 + $0x4] sm:$0x1] %vm28, %v48
    %s50 = sadd.s32 %s24, 5
    %s51 = sld [smem:[#allocation5 + %s50]]
    %s52 = scalar_lea.vmem %s1, %s51
    %v53 = vld [vmem:[%s52] sm:$0x1]
    %54 = vst.msk [vmem:[#allocation2 + $0x5] sm:$0x1] %vm28, %v53
    %s55 = sadd.s32 %s24, 6
    %s56 = sld [smem:[#allocation5 + %s55]]
    %s57 = scalar_lea.vmem %s1, %s56
    %v58 = vld [vmem:[%s57] sm:$0x1]
    %59 = vst.msk [vmem:[#allocation2 + $0x6] sm:$0x1] %vm28, %v58
    %s60 = sadd.s32 %s24, 7
    %s61 = sld [smem:[#allocation5 + %s60]]
    %s62 = scalar_lea.vmem %s1, %s61
    %v63 = vld [vmem:[%s62] sm:$0x1]
    %64 = vst.msk [vmem:[#allocation2 + $0x7] sm:$0x1] %vm28, %v63
    %s65 = sadd.s32 %s24, 8
    %s66 = sld [smem:[#allocation5 + %s65]]
    %s67 = scalar_lea.vmem %s1, %s66
    %v68 = vld [vmem:[%s67] sm:$0x1]
    %69 = vst.msk [vmem:[#allocation2 + $0x8] sm:$0x1] %vm28, %v68
    %s70 = sadd.s32 %s24, 9
    %s71 = sld [smem:[#allocation5 + %s70]]
    %s72 = scalar_lea.vmem %s1, %s71
    %v73 = vld [vmem:[%s72] sm:$0x1]
    %74 = vst.msk [vmem:[#allocation2 + $0x9] sm:$0x1] %vm28, %v73
    %s75 = sadd.s32 %s24, 10
    %s76 = sld [smem:[#allocation5 + %s75]]
    %s77 = scalar_lea.vmem %s1, %s76
    %v78 = vld [vmem:[%s77] sm:$0x1]
    %79 = vst.msk [vmem:[#allocation2 + $0xa] sm:$0x1] %vm28, %v78
    %s80 = sadd.s32 %s24, 11
    %s81 = sld [smem:[#allocation5 + %s80]]
    %s82 = scalar_lea.vmem %s1, %s81
    %v83 = vld [vmem:[%s82] sm:$0x1]
    %84 = vst.msk [vmem:[#allocation2 + $0xb] sm:$0x1] %vm28, %v83
    %s85 = sadd.s32 %s24, 12
    %s86 = sld [smem:[#allocation5 + %s85]]
    %s87 = scalar_lea.vmem %s1, %s86
    %v88 = vld [vmem:[%s87] sm:$0x1]
    %89 = vst.msk [vmem:[#allocation2 + $0xc] sm:$0x1] %vm28, %v88
    %s90 = sadd.s32 %s24, 13
    %s91 = sld [smem:[#allocation5 + %s90]]
    %s92 = scalar_lea.vmem %s1, %s91
    %v93 = vld [vmem:[%s92] sm:$0x1]
    %94 = vst.msk [vmem:[#allocation2 + $0xd] sm:$0x1] %vm28, %v93
    %s95 = sadd.s32 %s24, 14
    %s96 = sld [smem:[#allocation5 + %s95]]
    %s97 = scalar_lea.vmem %s1, %s96
    %v98 = vld [vmem:[%s97] sm:$0x1]
    %99 = vst.msk [vmem:[#allocation2 + $0xe] sm:$0x1] %vm28, %v98
    %s100 = sadd.s32 %s24, 15
    %s101 = sld [smem:[#allocation5 + %s100]]
    %s102 = scalar_lea.vmem %s1, %s101
    %v103 = vld [vmem:[%s102] sm:$0x1]
    %104 = vst.msk [vmem:[#allocation2 + $0xf] sm:$0x1] %vm28, %v103
    %s105 = sadd.s32 %s23, 1
    %s106 = smul.u32 %s105, 128
    %s107 = sld [smem:[#allocation5 + %s106]]
    %s108 = scalar_lea.vmem %s1, %s107
    %v109 = vld [vmem:[%s108] sm:$0x1]
    %110 = vst.msk [vmem:[#allocation2 + $0x10] sm:$0x1] %vm28, %v109
    %s111 = sadd.s32 %s106, 1
    %s112 = sld [smem:[#allocation5 + %s111]]
    %s113 = scalar_lea.vmem %s1, %s112
    %v114 = vld [vmem:[%s113] sm:$0x1]
    %115 = vst.msk [vmem:[#allocation2 + $0x11] sm:$0x1] %vm28, %v114
    %s116 = sadd.s32 %s106, 2
    %s117 = sld [smem:[#allocation5 + %s116]]
    %s118 = scalar_lea.vmem %s1, %s117
    %v119 = vld [vmem:[%s118] sm:$0x1]
    %120 = vst.msk [vmem:[#allocation2 + $0x12] sm:$0x1] %vm28, %v119
    %s121 = sadd.s32 %s106, 3
    %s122 = sld [smem:[#allocation5 + %s121]]
    %s123 = scalar_lea.vmem %s1, %s122
    %v124 = vld [vmem:[%s123] sm:$0x1]
    %125 = vst.msk [vmem:[#allocation2 + $0x13] sm:$0x1] %vm28, %v124
    %s126 = sadd.s32 %s106, 4
    %s127 = sld [smem:[#allocation5 + %s126]]
    %s128 = scalar_lea.vmem %s1, %s127
    %v129 = vld [vmem:[%s128] sm:$0x1]
    %130 = vst.msk [vmem:[#allocation2 + $0x14] sm:$0x1] %vm28, %v129
    %s131 = sadd.s32 %s106, 5
    %s132 = sld [smem:[#allocation5 + %s131]]
    %s133 = scalar_lea.vmem %s1, %s132
    %v134 = vld [vmem:[%s133] sm:$0x1]
    %135 = vst.msk [vmem:[#allocation2 + $0x15] sm:$0x1] %vm28, %v134
    %s136 = sadd.s32 %s106, 6
    %s137 = sld [smem:[#allocation5 + %s136]]
    %s138 = scalar_lea.vmem %s1, %s137
    %v139 = vld [vmem:[%s138] sm:$0x1]
    %140 = vst.msk [vmem:[#allocation2 + $0x16] sm:$0x1] %vm28, %v139
    %s141 = sadd.s32 %s106, 7
    %s142 = sld [smem:[#allocation5 + %s141]]
    %s143 = scalar_lea.vmem %s1, %s142
    %v144 = vld [vmem:[%s143] sm:$0x1]
    %145 = vst.msk [vmem:[#allocation2 + $0x17] sm:$0x1] %vm28, %v144
    %s146 = sadd.s32 %s106, 8
    %s147 = sld [smem:[#allocation5 + %s146]]
    %s148 = scalar_lea.vmem %s1, %s147
    %v149 = vld [vmem:[%s148] sm:$0x1]
    %150 = vst.msk [vmem:[#allocation2 + $0x18] sm:$0x1] %vm28, %v149
    %s151 = sadd.s32 %s106, 9
    %s152 = sld [smem:[#allocation5 + %s151]]
    %s153 = scalar_lea.vmem %s1, %s152
    %v154 = vld [vmem:[%s153] sm:$0x1]
    %155 = vst.msk [vmem:[#allocation2 + $0x19] sm:$0x1] %vm28, %v154
    %s156 = sadd.s32 %s106, 10
    %s157 = sld [smem:[#allocation5 + %s156]]
    %s158 = scalar_lea.vmem %s1, %s157
    %v159 = vld [vmem:[%s158] sm:$0x1]
    %160 = vst.msk [vmem:[#allocation2 + $0x1a] sm:$0x1] %vm28, %v159
    %s161 = sadd.s32 %s106, 11
    %s162 = sld [smem:[#allocation5 + %s161]]
    %s163 = scalar_lea.vmem %s1, %s162
    %v164 = vld [vmem:[%s163] sm:$0x1]
    %165 = vst.msk [vmem:[#allocation2 + $0x1b] sm:$0x1] %vm28, %v164
    %s166 = sadd.s32 %s106, 12
    %s167 = sld [smem:[#allocation5 + %s166]]
    %s168 = scalar_lea.vmem %s1, %s167
    %v169 = vld [vmem:[%s168] sm:$0x1]
    %170 = vst.msk [vmem:[#allocation2 + $0x1c] sm:$0x1] %vm28, %v169
    %s171 = sadd.s32 %s106, 13
    %s172 = sld [smem:[#allocation5 + %s171]]
    %s173 = scalar_lea.vmem %s1, %s172
    %v174 = vld [vmem:[%s173] sm:$0x1]
    %175 = vst.msk [vmem:[#allocation2 + $0x1d] sm:$0x1] %vm28, %v174
    %s176 = sadd.s32 %s106, 14
    %s177 = sld [smem:[#allocation5 + %s176]]
    %s178 = scalar_lea.vmem %s1, %s177
    %v179 = vld [vmem:[%s178] sm:$0x1]
    %180 = vst.msk [vmem:[#allocation2 + $0x1e] sm:$0x1] %vm28, %v179
    %s181 = sadd.s32 %s106, 15
    %s182 = sld [smem:[#allocation5 + %s181]]
    %s183 = scalar_lea.vmem %s1, %s182
    %v184 = vld [vmem:[%s183] sm:$0x1]
    %185 = vst.msk [vmem:[#allocation2 + $0x1f] sm:$0x1] %vm28, %v184
    %v186 = vld [vmem:[#allocation2] sm:$0xff]
    %v187 = vld [vmem:[#allocation2 + $0x8] sm:$0x3f]
    %vm188 = vcmask 261120
    %189 = vst.msk [vmem:[#allocation3] sm:$0xff] %vm188, %v186
    %vm190 = vcmask 259072
    %191 = vst.msk [vmem:[#allocation3 + $0x8] sm:$0x3f] %vm190, %v187
    %v192 = vld [vmem:[#allocation2 + $0x1] sm:$0xff]
    %v193 = vld [vmem:[#allocation2 + $0x9] sm:$0x3f]
    %196 = vrot.lane.b32.xlu0 %v192, 32
    %v197 = vpop.permute.xlu0 %196
    %198 = vrot.lane.b32.xlu0 %v193, 32
    %v199 = vpop.permute.xlu0 %198
    %vm202 = vcmask 523520
    %203 = vst.msk [vmem:[#allocation3] sm:$0xff] %vm202, %v197
    %vm204 = vcmask 521472
    %205 = vst.msk [vmem:[#allocation3 + $0x8] sm:$0x3f] %vm204, %v199
    %v206 = vld [vmem:[#allocation2 + $0x2] sm:$0xff]
    %v207 = vld [vmem:[#allocation2 + $0xa] sm:$0x3f]
    %210 = vrot.lane.b32.xlu0 %v206, 64
    %v211 = vpop.permute.xlu0 %210
    %212 = vrot.lane.b32.xlu0 %v207, 64
    %v213 = vpop.permute.xlu0 %212
    %vm216 = vcmask 785920
    %217 = vst.msk [vmem:[#allocation3] sm:$0xff] %vm216, %v211
    %vm218 = vcmask 783872
    %219 = vst.msk [vmem:[#allocation3 + $0x8] sm:$0x3f] %vm218, %v213
    %v220 = vld [vmem:[#allocation2 + $0x10] sm:$0xff]
    %v221 = vld [vmem:[#allocation2 + $0x18] sm:$0x3f]
    %222 = vst.msk [vmem:[#allocation3 + $0xe] sm:$0xff] %vm188, %v220
    %223 = vst.msk [vmem:[#allocation3 + $0x16] sm:$0x3f] %vm190, %v221
    %v224 = vld [vmem:[#allocation2 + $0x11] sm:$0xff]
    %v225 = vld [vmem:[#allocation2 + $0x19] sm:$0x3f]
    %228 = vrot.lane.b32.xlu0 %v224, 32
    %v229 = vpop.permute.xlu0 %228
    %230 = vrot.lane.b32.xlu0 %v225, 32
    %v231 = vpop.permute.xlu0 %230
    %234 = vst.msk [vmem:[#allocation3 + $0xe] sm:$0xff] %vm202, %v229
    %235 = vst.msk [vmem:[#allocation3 + $0x16] sm:$0x3f] %vm204, %v231
    %v236 = vld [vmem:[#allocation2 + $0x12] sm:$0xff]
    %v237 = vld [vmem:[#allocation2 + $0x1a] sm:$0x3f]
    %240 = vrot.lane.b32.xlu0 %v236, 64
    %v241 = vpop.permute.xlu0 %240
    %242 = vrot.lane.b32.xlu0 %v237, 64
    %v243 = vpop.permute.xlu0 %242
    %246 = vst.msk [vmem:[#allocation3 + $0xe] sm:$0xff] %vm216, %v241
    %247 = vst.msk [vmem:[#allocation3 + $0x16] sm:$0x3f] %vm218, %v243
    %v248 = vld [vmem:[#allocation3] sm:$0xff]
    %v249 = vld [vmem:[#allocation3 + $0x8] sm:$0xff]
    %v250 = vld [vmem:[#allocation3 + $0x10] sm:$0xff]
    %v251 = vld [vmem:[#allocation3 + $0x18] sm:$0xf]
    %v252 = vpack.c.bf16 %v249, %v248
    %v253 = vpack.c.bf16 %v251, %v250
    %v254 = vld [vmem:[%s2] sm:$0xf]
    %v255 = vld [vmem:[%s2 + $0x4] sm:$0xf]
    %v256 = vld [vmem:[%s2 + $0x8] sm:$0xf]
    %v257 = vld [vmem:[%s2 + $0xc] sm:$0xf]
    %v258 = vld [vmem:[%s2 + $0x10] sm:$0xf]
    %v259 = vld [vmem:[%s2 + $0x14] sm:$0xf]
    %v260 = vld [vmem:[%s2 + $0x18] sm:$0xf]
    %v261 = vld [vmem:[%s2 + $0x1c] sm:$0xf]
    %v262 = vld [vmem:[%s2 + $0x20] sm:$0xf]
    %v263 = vld [vmem:[%s2 + $0x24] sm:$0xf]
    %v264 = vld [vmem:[%s2 + $0x28] sm:$0xf]
    %v265 = vld [vmem:[%s2 + $0x2c] sm:$0xf]
    %v266 = vld [vmem:[%s3] sm:$0x1]
    %v268 = vlaneseq
    %v269 = vshrl.u32 %v268, 7
    %v270 = vsub.s32 0, %v269
    %v271 = vrot.slane %v266, %v270
    %v285 = vunpack.c.l.b16 %v254
    %v286 = vunpack.c.l.b16 %v255
    %v287 = vunpack.c.l.b16 %v256
    %v288 = vunpack.c.l.b16 %v257
    %v289 = vunpack.c.l.b16 %v258
    %v290 = vunpack.c.l.b16 %v259
    %v291 = vunpack.c.l.b16 %v260
    %v292 = vunpack.c.l.b16 %v261
    %v293 = vunpack.c.l.b16 %v262
    %v294 = vunpack.c.l.b16 %v263
    %v295 = vunpack.c.l.b16 %v264
    %v296 = vunpack.c.l.b16 %v265
    %v297 = vpack.c.b16 %v286, %v285
    %v298 = vpack.c.b16 %v288, %v287
    %v299 = vpack.c.b16 %v290, %v289
    %v300 = vpack.c.b16 %v292, %v291
    %v301 = vpack.c.b16 %v294, %v293
    %v302 = vpack.c.b16 %v296, %v295
    %vm309 = vcmask 785408
    %v311 = vsel %vm309, %v252, 0
    %v314 = vsel %vm309, %v253, 0
    %316 = vmatprep.subr.bf16.mxu0 0
    %317 = vmatpush1.bf16.msra.mxu0 %v297
    %318 = vmatprep.subr.bf16.mxu0 0
    %319 = vmatpush1.bf16.msra.mxu0 %v298
    %320 = vmatprep.subr.bf16.mxu0 0
    %321 = vmatpush1.bf16.msra.mxu0 %v299
    %322 = vmatprep.subr.bf16.mxu0 0
    %323 = vmatpush1.bf16.msra.mxu0 %v300
    %324 = vmatprep.subr.bf16.mxu0 0
    %325 = vmatpush1.bf16.msra.mxu0 %v301
    %326 = vmatprep.subr.bf16.mxu0 0
    %327 = vmatpush1.bf16.msra.mxu0 %v302
    %328 = vmatprep.subr.bf16.mxu0 0
    %329 = vmatpush1.bf16.msra.mxu0 0
    %330 = vmatprep.subr.bf16.mxu0 0
    %331 = vmatpush1.bf16.msra.mxu0 0
    %332 = vmatprep.subr.bf16.mxu0 0
    %333 = vmatpush1.bf16.msra.mxu0 0
    %334 = vmatprep.subr.bf16.mxu0 0
    %335 = vmatpush1.bf16.msra.mxu0 0
    %336 = vmatprep.subr.bf16.mxu0 0
    %337 = vmatpush1.bf16.msra.mxu0 0
    %338 = vmatprep.subr.bf16.mxu0 0
    %339 = vmatpush1.bf16.msra.mxu0 0
    %340 = vmatprep.subr.bf16.mxu0 0
    %341 = vmatpush1.bf16.msra.mxu0 0
    %342 = vmatprep.subr.bf16.mxu0 0
    %343 = vmatpush1.bf16.msra.mxu0 0
    %344 = vmatprep.subr.bf16.mxu0 0
    %345 = vmatpush1.bf16.msra.mxu0 0
    %346 = vmatprep.subr.bf16.mxu0 0
    %347 = vmatpush1.bf16.msra.mxu0 0
    %348 = vmatprep.mubr.bf16.mxu0 0
    %349 = vmatmul.mubr.bf16.gmra.mrb[0].mxu0 %v311
    %v350 = vpop.f32.mrb[0].mxu0
    %v351 = vadd.f32 %v271, %v350
    %v352 = vpop.f32.mrb[0].mxu0
    %v353 = vpop.f32.mrb[0].mxu0
    %v354 = vadd.f32 %v271, %v353
    %v355 = vpop.f32.mrb[0].mxu0
    %356 = vmatprep.mubr.bf16.mxu0 0
    %357 = vmatmul.mubr.bf16.gmra.mrb[0].mxu0 %v314
    %v358 = vpop.f32.mrb[0].mxu0
    %v359 = vadd.f32 %v271, %v358
    %v360 = vpop.f32.mrb[0].mxu0
    %v361 = vpop.f32.mrb[0].mxu0
    %v362 = vadd.f32 %v271, %v361
    %v363 = vpop.f32.mrb[0].mxu0
    %364 = vdwg.mxu0
    %v365 = vtanh.pop %v351
    %v366 = vtanh.pop %v354
    %v367 = vtanh.pop %v359
    %v368 = vtanh.pop %v362
    %vm369 = vcmask 130048
    %v370 = vsel %vm369, %v365, -inf
    %vm371 = vcmask 128000
    %v372 = vsel %vm371, %v366, -inf
    %v373 = vmax.f32 %v370, %v372
    %v374 = vrot.slane %v373, 4
    %v375 = vmax.f32 %v373, %v374
    %v376 = vrot.slane %v375, 2
    %v377 = vmax.f32 %v375, %v376
    %v378 = vrot.slane %v377, 1
    %v379 = vmax.f32 %v377, %v378
    %vm380 = vcmask 130054
    %v381 = vsel %vm380, %v366, -inf
    %v382 = vsel %vm369, %v367, -inf
    %vm383 = vcmask 125952
    %v384 = vsel %vm383, %v368, -inf
    %v385 = vmax.f32 %v381, %v382
    %v386 = vmax.f32 %v385, %v384
    %v387 = vrot.slane %v386, 4
    %v388 = vmax.f32 %v386, %v387
    %v389 = vrot.slane %v388, 2
    %v390 = vmax.f32 %v388, %v389
    %v391 = vrot.slane %v390, 1
    %v392 = vmax.f32 %v390, %v391
    %vm393 = vcmask 1040384
    %v394 = vsel %vm393, %v379, %v392
    %vm395 = vcmask 123904
    %396 = vst.msk [vmem:[#allocation6] sm:$0x3] %vm395, %v394
    // Predicated region
    $region14: #{tpu_custom_call.1} parent=1 // pred_check
      _
    $region15: #{tpu_custom_call.1} parent=1 // pred_check_branch
      %398 = sbr.rel (0) target = $region17
    $region16: #{tpu_custom_call.1} parent=1 // pred_region
      %s400 = ssub.s32 32, 32
      %401 = vsyncadd [#allocation7], %s400
      %s403 = sshll.u32 [#allocation6], 4
      %s404 = int_to_ptr.vmem [resolvable:$true] %s403
      %406 = dma.vmem_to_hbm [thread:$0]  %s404, 32, %s4, [#allocation7]
    $region17: #{tpu_custom_call.1} parent=1 // pred_fallthru
      _
    // Predicated region
    $region18: #{tpu_custom_call.1} parent=1 // pred_check
      _
    $region19: #{tpu_custom_call.1} parent=1 // pred_check_branch
      %408 = sbr.rel (0) target = $region21
    $region20: #{tpu_custom_call.1} parent=1 // pred_region
      %409 = dma.done [#allocation7], 32
    $region21: #{tpu_custom_call.1} parent=1 // pred_fallthru
      _
    %410 = vsyncpa [#allocation7], 1

</llo_original>
